<compile_context>
chip_gen: v7x
topology: tpu7x:2x2x1
jax: 0.10.0
libtpu: 0.0.40
codegen_flags: <defaults>
</compile_context>

<pallas_src>
import jax
import jax.numpy as jnp
from jax.experimental import pallas as pl
from jax.experimental.pallas import tpu as pltpu


def outconv_kernel(x_ref, w_ref, b_ref, o_ref):
    # x_ref: (C_in, tile)   VMEM — channels on sublanes, spatial on lanes
    # w_ref: (C_out, C_in)  SMEM — read element-wise as scalars
    # b_ref: (C_out,)       SMEM — read element-wise as scalars
    # o_ref: (C_out, tile)  VMEM — lane-dense output block
    c_in = x_ref.shape[0]
    c_out = o_ref.shape[0]

    x = x_ref[...].astype(jnp.float32)
    # Hoist the per-input-channel row views once (JAX does not CSE repeated
    # slices/broadcasts — do not re-slice inside the output loop).
    x_rows = [x[k:k + 1, :] for k in range(c_in)]

    for o in range(c_out):
        # Scalar-x-vector FMAs from SMEM scalars; bias folded into the init.
        acc = x_rows[0] * w_ref[o, 0] + b_ref[o]
        for k in range(1, c_in):
            acc = acc + x_rows[k] * w_ref[o, k]
        o_ref[o:o + 1, :] = jax.nn.sigmoid(acc).astype(o_ref.dtype)


def _pick_tile(n, hw, tm):
    """Spatial tile: multiple of 128 lanes, as big as possible, but keep the
    parallel grid (N x spatial tiles) >= ~8 steps so both v7x TCs get work."""
    hw128 = pl.cdiv(hw, 128) * 128
    tile = min(tm, hw128)
    min_tile = min(512, hw128)          # never shrink below 512 lanes
    while n * pl.cdiv(hw, tile) < 8 and tile > min_tile:
        tile = max(min_tile, ((tile // 2) + 127) // 128 * 128)
    return tile


def out_conv(x_nchw, weight, bias, *, tm=8192):
    """1x1 conv + sigmoid, NCHW in / NCHW out (matches PyTorch OutConv).

    x_nchw: (N, C_in, H, W) float32
    weight: (C_out, C_in) or PyTorch (C_out, C_in, 1, 1)
    bias:   (C_out,)
    returns (N, C_out, H, W)
    """
    N, C_in, H, W = x_nchw.shape
    if weight.ndim == 4:  # PyTorch Conv2d weight layout (C_out, C_in, 1, 1)
        weight = weight.reshape(weight.shape[0], weight.shape[1])
    C_out = weight.shape[0]
    HW = H * W

    tile = _pick_tile(N, HW, tm)
    n_tiles = pl.cdiv(HW, tile)

    # Free reshape only — no transposes, no padding, no post-slice.
    x = x_nchw.reshape(N, C_in, HW)

    cost = pl.CostEstimate(
        flops=2 * N * HW * C_in * C_out,
        transcendentals=N * HW * C_out,
        bytes_accessed=4 * (N * HW * (C_in + C_out) + C_out * C_in + C_out),
    )

    out = pl.pallas_call(
        outconv_kernel,
        out_shape=jax.ShapeDtypeStruct((N, C_out, HW), x_nchw.dtype),
        grid_spec=pltpu.PrefetchScalarGridSpec(
            num_scalar_prefetch=0,
            grid=(N, n_tiles),
            in_specs=[
                # batch dim squeezed out of the kernel ref; partial last
                # spatial block is padded on load / masked on store by Pallas.
                pl.BlockSpec((None, C_in, tile), lambda n, i: (n, 0, i)),
                pl.BlockSpec(memory_space=pltpu.MemorySpace.SMEM),  # weight
                pl.BlockSpec(memory_space=pltpu.MemorySpace.SMEM),  # bias
            ],
            out_specs=pl.BlockSpec((None, C_out, tile), lambda n, i: (n, 0, i)),
        ),
        compiler_params=pltpu.CompilerParams(
            dimension_semantics=("parallel", "parallel"),
        ),
        cost_estimate=cost,
    )(x, weight, bias)

    # TODO(synk): if profiling on v6e shows exposed input DMA at small tiles,
    # sweep pipeline_mode=pl.Buffered(3) on the x BlockSpec.
    return out.reshape(N, C_out, H, W)


def _reference(x, weight, bias):
    return jax.nn.sigmoid(
        jnp.einsum("nchw,oc->nohw", x, weight) + bias[None, :, None, None]
    )


if __name__ == "__main__":
    key = jax.random.PRNGKey(0)
    N, C_in, C_out, H, W = 2, 4, 3, 16, 16

    kx, kw, kb, kx2 = jax.random.split(key, 4)
    x = jax.random.normal(kx, (N, C_in, H, W), dtype=jnp.float32)
    # deterministic synthetic parameter init (kaiming-uniform-like bound)
    bound = 1.0 / (C_in ** 0.5)
    weight = jax.random.uniform(kw, (C_out, C_in), minval=-bound, maxval=bound,
                                dtype=jnp.float32)
    bias = jax.random.uniform(kb, (C_out,), minval=-bound, maxval=bound,
                              dtype=jnp.float32)

    out = jax.block_until_ready(out_conv(x, weight, bias))
    ref = _reference(x, weight, bias)
    assert out.shape == (N, C_out, H, W)
    assert jnp.allclose(out, ref, atol=1e-5, rtol=1e-5)

    # Second check: spatial extent not a multiple of the tile — exercises the
    # unpadded grid with a masked partial last block (no jnp.pad / slice).
    x2 = jax.random.normal(kx2, (1, C_in, 24, 24), dtype=jnp.float32)
    out2 = jax.block_until_ready(out_conv(x2, weight, bias, tm=256))
    ref2 = _reference(x2, weight, bias)
    assert out2.shape == (1, C_out, 24, 24)
    assert jnp.allclose(out2, ref2, atol=1e-5, rtol=1e-5)

    print("KERNEL_OK")
</pallas_src>

<mosaic_0001>
module attributes {stable_mosaic.version = 11 : i64} {
  func.func @outconv_kernel(%arg0: i32, %arg1: i32, %arg2: memref<1x4x256xf32, #tpu.memory_space<vmem>>, %arg3: memref<3x4xf32, #tpu.memory_space<smem>>, %arg4: memref<3xf32, #tpu.memory_space<smem>>, %arg5: memref<1x3x256xf32, #tpu.memory_space<vmem>>) attributes {dimension_semantics = [#tpu.dimension_semantics<parallel>, #tpu.dimension_semantics<parallel>], iteration_bounds = array<i64: 2, 1>, scalar_prefetch = 0 : i64, scratch_operands = 0 : i64, tpu.core_type = #tpu.core_type<tc>, window_params = [{transform_indices = @transform_0, window_bounds = array<i64: 1, 4, 256>}, {transform_indices = @transform_1, window_bounds = array<i64: 3, 4>}, {transform_indices = @transform_2, window_bounds = array<i64: 3>}, {transform_indices = @transform_3, window_bounds = array<i64: 1, 3, 256>}]} {
    %c0 = arith.constant 0 : index
    %c0_0 = arith.constant 0 : index
    %c0_1 = arith.constant 0 : index
    %0 = vector.load %arg2[%c0, %c0_0, %c0_1] : memref<1x4x256xf32, #tpu.memory_space<vmem>>, vector<1x4x256xf32>
    %1 = vector.shape_cast %0 : vector<1x4x256xf32> to vector<4x256xf32>
    %2 = vector.extract_strided_slice %1 {offsets = [0, 0], sizes = [1, 256], strides = [1, 1]} : vector<4x256xf32> to vector<1x256xf32>
    %3 = vector.extract_strided_slice %1 {offsets = [1, 0], sizes = [1, 256], strides = [1, 1]} : vector<4x256xf32> to vector<1x256xf32>
    %4 = vector.extract_strided_slice %1 {offsets = [2, 0], sizes = [1, 256], strides = [1, 1]} : vector<4x256xf32> to vector<1x256xf32>
    %5 = vector.extract_strided_slice %1 {offsets = [3, 0], sizes = [1, 256], strides = [1, 1]} : vector<4x256xf32> to vector<1x256xf32>
    %c0_2 = arith.constant 0 : index
    %c0_3 = arith.constant 0 : index
    %6 = memref.load %arg3[%c0_2, %c0_3] : memref<3x4xf32, #tpu.memory_space<smem>>
    %7 = vector.broadcast %6 : f32 to vector<1x256xf32>
    %8 = arith.mulf %2, %7 : vector<1x256xf32>
    %c0_4 = arith.constant 0 : index
    %9 = memref.load %arg4[%c0_4] : memref<3xf32, #tpu.memory_space<smem>>
    %10 = vector.broadcast %9 : f32 to vector<1x256xf32>
    %11 = arith.addf %8, %10 : vector<1x256xf32>
    %c0_5 = arith.constant 0 : index
    %c1 = arith.constant 1 : index
    %12 = memref.load %arg3[%c0_5, %c1] : memref<3x4xf32, #tpu.memory_space<smem>>
    %13 = vector.broadcast %12 : f32 to vector<1x256xf32>
    %14 = arith.mulf %3, %13 : vector<1x256xf32>
    %15 = arith.addf %11, %14 : vector<1x256xf32>
    %c0_6 = arith.constant 0 : index
    %c2 = arith.constant 2 : index
    %16 = memref.load %arg3[%c0_6, %c2] : memref<3x4xf32, #tpu.memory_space<smem>>
    %17 = vector.broadcast %16 : f32 to vector<1x256xf32>
    %18 = arith.mulf %4, %17 : vector<1x256xf32>
    %19 = arith.addf %15, %18 : vector<1x256xf32>
    %c0_7 = arith.constant 0 : index
    %c3 = arith.constant 3 : index
    %20 = memref.load %arg3[%c0_7, %c3] : memref<3x4xf32, #tpu.memory_space<smem>>
    %21 = vector.broadcast %20 : f32 to vector<1x256xf32>
    %22 = arith.mulf %5, %21 : vector<1x256xf32>
    %23 = arith.addf %19, %22 : vector<1x256xf32>
    %24 = arith.negf %23 : vector<1x256xf32>
    %25 = math.exp %24 : vector<1x256xf32>
    %cst = arith.constant 1.000000e+00 : f32
    %26 = vector.broadcast %cst : f32 to vector<1x256xf32>
    %27 = arith.addf %26, %25 : vector<1x256xf32>
    %28 = arith.divf %26, %27 : vector<1x256xf32>
    %c0_8 = arith.constant 0 : index
    %c0_9 = arith.constant 0 : index
    %c0_10 = arith.constant 0 : index
    %29 = vector.load %arg5[%c0_8, %c0_9, %c0_10] : memref<1x3x256xf32, #tpu.memory_space<vmem>>, vector<1x1x256xf32>
    %30 = vector.shape_cast %29 : vector<1x1x256xf32> to vector<1x256xf32>
    %31 = vector.shape_cast %28 : vector<1x256xf32> to vector<1x1x256xf32>
    tpu.vector_store %arg5[%c0_8, %c0_9, %c0_10], %31 {strides = array<i32>} : memref<1x3x256xf32, #tpu.memory_space<vmem>>, vector<1x1x256xf32>,
    %c1_11 = arith.constant 1 : index
    %c0_12 = arith.constant 0 : index
    %32 = memref.load %arg3[%c1_11, %c0_12] : memref<3x4xf32, #tpu.memory_space<smem>>
    %33 = vector.broadcast %32 : f32 to vector<1x256xf32>
    %34 = arith.mulf %2, %33 : vector<1x256xf32>
    %c1_13 = arith.constant 1 : index
    %35 = memref.load %arg4[%c1_13] : memref<3xf32, #tpu.memory_space<smem>>
    %36 = vector.broadcast %35 : f32 to vector<1x256xf32>
    %37 = arith.addf %34, %36 : vector<1x256xf32>
    %c1_14 = arith.constant 1 : index
    %c1_15 = arith.constant 1 : index
    %38 = memref.load %arg3[%c1_14, %c1_15] : memref<3x4xf32, #tpu.memory_space<smem>>
    %39 = vector.broadcast %38 : f32 to vector<1x256xf32>
    %40 = arith.mulf %3, %39 : vector<1x256xf32>
    %41 = arith.addf %37, %40 : vector<1x256xf32>
    %c1_16 = arith.constant 1 : index
    %c2_17 = arith.constant 2 : index
    %42 = memref.load %arg3[%c1_16, %c2_17] : memref<3x4xf32, #tpu.memory_space<smem>>
    %43 = vector.broadcast %42 : f32 to vector<1x256xf32>
    %44 = arith.mulf %4, %43 : vector<1x256xf32>
    %45 = arith.addf %41, %44 : vector<1x256xf32>
    %c1_18 = arith.constant 1 : index
    %c3_19 = arith.constant 3 : index
    %46 = memref.load %arg3[%c1_18, %c3_19] : memref<3x4xf32, #tpu.memory_space<smem>>
    %47 = vector.broadcast %46 : f32 to vector<1x256xf32>
    %48 = arith.mulf %5, %47 : vector<1x256xf32>
    %49 = arith.addf %45, %48 : vector<1x256xf32>
    %50 = arith.negf %49 : vector<1x256xf32>
    %51 = math.exp %50 : vector<1x256xf32>
    %cst_20 = arith.constant 1.000000e+00 : f32
    %52 = vector.broadcast %cst_20 : f32 to vector<1x256xf32>
    %53 = arith.addf %52, %51 : vector<1x256xf32>
    %54 = arith.divf %52, %53 : vector<1x256xf32>
    %c0_21 = arith.constant 0 : index
    %c1_22 = arith.constant 1 : index
    %c0_23 = arith.constant 0 : index
    %55 = vector.load %arg5[%c0_21, %c1_22, %c0_23] : memref<1x3x256xf32, #tpu.memory_space<vmem>>, vector<1x1x256xf32>
    %56 = vector.shape_cast %55 : vector<1x1x256xf32> to vector<1x256xf32>
    %57 = vector.shape_cast %54 : vector<1x256xf32> to vector<1x1x256xf32>
    tpu.vector_store %arg5[%c0_21, %c1_22, %c0_23], %57 {strides = array<i32>} : memref<1x3x256xf32, #tpu.memory_space<vmem>>, vector<1x1x256xf32>,
    %c2_24 = arith.constant 2 : index
    %c0_25 = arith.constant 0 : index
    %58 = memref.load %arg3[%c2_24, %c0_25] : memref<3x4xf32, #tpu.memory_space<smem>>
    %59 = vector.broadcast %58 : f32 to vector<1x256xf32>
    %60 = arith.mulf %2, %59 : vector<1x256xf32>
    %c2_26 = arith.constant 2 : index
    %61 = memref.load %arg4[%c2_26] : memref<3xf32, #tpu.memory_space<smem>>
    %62 = vector.broadcast %61 : f32 to vector<1x256xf32>
    %63 = arith.addf %60, %62 : vector<1x256xf32>
    %c2_27 = arith.constant 2 : index
    %c1_28 = arith.constant 1 : index
    %64 = memref.load %arg3[%c2_27, %c1_28] : memref<3x4xf32, #tpu.memory_space<smem>>
    %65 = vector.broadcast %64 : f32 to vector<1x256xf32>
    %66 = arith.mulf %3, %65 : vector<1x256xf32>
    %67 = arith.addf %63, %66 : vector<1x256xf32>
    %c2_29 = arith.constant 2 : index
    %c2_30 = arith.constant 2 : index
    %68 = memref.load %arg3[%c2_29, %c2_30] : memref<3x4xf32, #tpu.memory_space<smem>>
    %69 = vector.broadcast %68 : f32 to vector<1x256xf32>
    %70 = arith.mulf %4, %69 : vector<1x256xf32>
    %71 = arith.addf %67, %70 : vector<1x256xf32>
    %c2_31 = arith.constant 2 : index
    %c3_32 = arith.constant 3 : index
    %72 = memref.load %arg3[%c2_31, %c3_32] : memref<3x4xf32, #tpu.memory_space<smem>>
    %73 = vector.broadcast %72 : f32 to vector<1x256xf32>
    %74 = arith.mulf %5, %73 : vector<1x256xf32>
    %75 = arith.addf %71, %74 : vector<1x256xf32>
    %76 = arith.negf %75 : vector<1x256xf32>
    %77 = math.exp %76 : vector<1x256xf32>
    %cst_33 = arith.constant 1.000000e+00 : f32
    %78 = vector.broadcast %cst_33 : f32 to vector<1x256xf32>
    %79 = arith.addf %78, %77 : vector<1x256xf32>
    %80 = arith.divf %78, %79 : vector<1x256xf32>
    %c0_34 = arith.constant 0 : index
    %c2_35 = arith.constant 2 : index
    %c0_36 = arith.constant 0 : index
    %81 = vector.load %arg5[%c0_34, %c2_35, %c0_36] : memref<1x3x256xf32, #tpu.memory_space<vmem>>, vector<1x1x256xf32>
    %82 = vector.shape_cast %81 : vector<1x1x256xf32> to vector<1x256xf32>
    %83 = vector.shape_cast %80 : vector<1x256xf32> to vector<1x1x256xf32>
    tpu.vector_store %arg5[%c0_34, %c2_35, %c0_36], %83 {strides = array<i32>} : memref<1x3x256xf32, #tpu.memory_space<vmem>>, vector<1x1x256xf32>,
    return
  }
  func.func @transform_0(%arg0: i32, %arg1: i32) -> (i32, i32, i32) {
    %c0_i32 = arith.constant 0 : i32
    %c0_i32_0 = arith.constant 0 : i32
    return %arg0, %c0_i32, %arg1 : i32, i32, i32
  }
  func.func @transform_1(%arg0: i32, %arg1: i32) -> (i32, i32) {
    %c0_i32 = arith.constant 0 : i32
    %c0_i32_0 = arith.constant 0 : i32
    %c0_i32_1 = arith.constant 0 : i32
    return %c0_i32, %c0_i32_0 : i32, i32
  }
  func.func @transform_2(%arg0: i32, %arg1: i32) -> i32 {
    %c0_i32 = arith.constant 0 : i32
    %c0_i32_0 = arith.constant 0 : i32
    return %c0_i32 : i32
  }
  func.func @transform_3(%arg0: i32, %arg1: i32) -> (i32, i32, i32) {
    %c0_i32 = arith.constant 0 : i32
    %c0_i32_0 = arith.constant 0 : i32
    return %arg0, %c0_i32, %arg1 : i32, i32, i32
  }
}

</mosaic_0001>

<llo_original>
// kernel: tpu_custom_call.1
$region0: #{tpu_custom_call.1}
  #allocation0 [shape = 'u32[]', space=smem, size = 0x4, offset = 0x4, fixed_abs, tag = 'smem constant byte address 0x4 - core index']
  #allocation1 [shape = 'u32[144,128]{1,0:T(1,128)}', space=vmem, size = 0x12000, scoped, tag = 'internal scratch']
  %s0 = inlined_call_operand.hbm [shape: f32[2,4,256], index: 0, kind: input, shape index: {}]
  %s1 = inlined_call_operand.hbm [shape: f32[3,4], index: 1, kind: input, shape index: {}]
  %s2 = inlined_call_operand.vmem [shape: f32[3], index: 2, kind: input, shape index: {}]
  %s3 = inlined_call_operand.vmem [shape: f32[2,3,256], index: 3, kind: output, shape index: {}]
  %s4 = sld [smem:[#allocation0]]
  $region57: #{tpu_custom_call.1} parent=0
    _
  %s6 = ssub.s32 1, %s4
  %s7 = scalar_select 0, %s6, %s4
  $region1: #{tpu_custom_call.1} parent=0
    #allocation2 [shape = 'u8[8192]{0}', space=vmem, size = 0x2000, scoped, tag = 'input window, operand 0']
    #allocation3 [shape = 's32[2]{0}', space=sflag, size = 0x8, scoped, tag = 'scoped memory for tpu_custom_call.1']
    #allocation4 [shape = 's32[2]{0}', space=sflag, size = 0x8, scoped, tag = 'scoped memory for tpu_custom_call.1']
    #allocation5 [shape = 's32[2]{0}', space=sflag, size = 0x8, scoped, tag = 'scoped memory for tpu_custom_call.1']
    #allocation6 [shape = 'u8[2048]{0}', space=smem, size = 0x800, scoped, tag = 'input window, operand 1, single buffered']
    #allocation7 [shape = 'u8[512]{0}', space=smem, size = 0x200, scoped, tag = 'input window, operand 2, single buffered']
    %8 = vsyncpa [#allocation3], 0
    %s9 = scalar_lea.sflag [#allocation3], 1
    %10 = vsyncpa %s9, 0
    %11 = vsyncpa [#allocation4], 0
    %12 = vsyncpa [#allocation5], 0
    loop: start=0, step=1, limit=4
    $region2: #{tpu_custom_call.1} parent=1 // loop_pre_header
      _
    $region3: #{tpu_custom_call.1} parent=1 // loop_header
      %s14 = sphi 0, %s18
      %p15 = scmp.ge.s32.totalorder %s14, 4
      %s21 = sphi 0, %s33
      %s22 = sphi 0, %s29
      %s23 = sphi 0, %s21
      %s24 = sphi 0, %s22
      %s25 = sphi 0, %s23
      %s26 = sphi 0, %s24
      %s38 = sphi 0, %s40
      %s41 = sphi 0, %s38
      %s42 = sphi 0, %s41
      %s58 = sphi 0, %s42
      %s62 = sphi 0, %s62
      %s64 = sphi 0, %s62
      %s65 = sphi 0, %s64
      %s79 = sphi 0, %s65
      %s83 = sphi 0, %s83
      %s85 = sphi 0, %s83
      %s86 = sphi 0, %s85
      %s100 = sphi 0, %s86
      %s108 = sphi 0, %s110
      %s111 = sphi 0, %s108
      %s112 = sphi 0, %s111
      %s128 = sphi 0, %s112
    $region4: #{tpu_custom_call.1} parent=1 // loop_header_branch
      %17 = sbr.rel (%p15) target = $region8
    $region5: #{tpu_custom_call.1} parent=1 // loop_body
      %s19 = ssub.s32 %s14, 1
      %s20 = ssub.s32 %s14, 2
      %s27 = sadd.s32 1, %s22
      %p28 = scmp.ge.s32.totalorder %s27, 1
      %s29 = scalar_select %p28, 0, %s27
      %s30 = sadd.s32 1, %s21
      %s31 = scalar_select %p28, %s30, %s21
      %p32 = scmp.ge.s32.totalorder %s31, 2
      %s33 = scalar_select %p32, 0, %s31
      %s34 = ssub.s32 %s21, %s33
      %s35 = ssub.s32 %s22, %s29
      %s36 = sor.u32 %s34, %s35
      %p37 = scmp.eq.s32.totalorder %s36, 0
      %s39 = sadd.s32 %s38, 1
      %s40 = scalar_select %p37, %s38, %s39
      %p43 = pneg %p37
      %p44 = scmp.eq.s32.totalorder %s14, 1
      %p45 = por %p43, %p44
      %p46 = scmp.ne.s32.totalorder %s38, %s41
      %p47 = scmp.eq.s32.totalorder %s14, 0
      %p48 = por %p46, %p47
      %p49 = scmp.ne.s32.totalorder %s38, %s41
      %p50 = scmp.eq.s32.totalorder %s19, 1
      %p51 = por %p49, %p50
      %p52 = scmp.ne.s32.totalorder %s41, %s42
      %p53 = scmp.eq.s32.totalorder %s19, 0
      %p54 = por %p52, %p53
      %p55 = scmp.ne.s32.totalorder %s41, %s42
      %p56 = scmp.eq.s32.totalorder %s20, 1
      %p57 = por %p55, %p56
      %p59 = scmp.ne.s32.totalorder %s42, %s58
      %p60 = scmp.eq.s32.totalorder %s20, 0
      %p61 = por %p59, %p60
      %s63 = sadd.s32 %s62, 1
      %p66 = scmp.eq.s32.totalorder %s14, 1
      %p67 = scmp.ne.s32.totalorder %s62, %s64
      %p68 = scmp.eq.s32.totalorder %s14, 0
      %p69 = por %p67, %p68
      %p70 = scmp.ne.s32.totalorder %s62, %s64
      %p71 = scmp.eq.s32.totalorder %s19, 1
      %p72 = por %p70, %p71
      %p73 = scmp.ne.s32.totalorder %s64, %s65
      %p74 = scmp.eq.s32.totalorder %s19, 0
      %p75 = por %p73, %p74
      %p76 = scmp.ne.s32.totalorder %s64, %s65
      %p77 = scmp.eq.s32.totalorder %s20, 1
      %p78 = por %p76, %p77
      %p80 = scmp.ne.s32.totalorder %s65, %s79
      %p81 = scmp.eq.s32.totalorder %s20, 0
      %p82 = por %p80, %p81
      %s84 = sadd.s32 %s83, 1
      %p87 = scmp.eq.s32.totalorder %s14, 1
      %p88 = scmp.ne.s32.totalorder %s83, %s85
      %p89 = scmp.eq.s32.totalorder %s14, 0
      %p90 = por %p88, %p89
      %p91 = scmp.ne.s32.totalorder %s83, %s85
      %p92 = scmp.eq.s32.totalorder %s19, 1
      %p93 = por %p91, %p92
      %p94 = scmp.ne.s32.totalorder %s85, %s86
      %p95 = scmp.eq.s32.totalorder %s19, 0
      %p96 = por %p94, %p95
      %p97 = scmp.ne.s32.totalorder %s85, %s86
      %p98 = scmp.eq.s32.totalorder %s20, 1
      %p99 = por %p97, %p98
      %p101 = scmp.ne.s32.totalorder %s86, %s100
      %p102 = scmp.eq.s32.totalorder %s20, 0
      %p103 = por %p101, %p102
      %s104 = ssub.s32 %s21, %s33
      %s105 = ssub.s32 %s22, %s29
      %s106 = sor.u32 %s104, %s105
      %p107 = scmp.eq.s32.totalorder %s106, 0
      %s109 = sadd.s32 %s108, 1
      %s110 = scalar_select %p107, %s108, %s109
      %p113 = pneg %p107
      %p114 = scmp.eq.s32.totalorder %s14, 1
      %p115 = por %p113, %p114
      %p116 = scmp.ne.s32.totalorder %s108, %s111
      %p117 = scmp.eq.s32.totalorder %s14, 0
      %p118 = por %p116, %p117
      %p119 = scmp.ne.s32.totalorder %s108, %s111
      %p120 = scmp.eq.s32.totalorder %s19, 1
      %p121 = por %p119, %p120
      %p122 = scmp.ne.s32.totalorder %s111, %s112
      %p123 = scmp.eq.s32.totalorder %s19, 0
      %p124 = por %p122, %p123
      %p125 = scmp.ne.s32.totalorder %s111, %s112
      %p126 = scmp.eq.s32.totalorder %s20, 1
      %p127 = por %p125, %p126
      %p129 = scmp.ne.s32.totalorder %s112, %s128
      %p130 = scmp.eq.s32.totalorder %s20, 0
      %p131 = por %p129, %p130
      %p132 = scmp.le.s32.totalorder 1, %s14
      %p133 = scmp.lt.s32.totalorder %s14, 3
      %p134 = pnand %p132, %p133
      %p135 = pneg %p134
      // Predicated region
      $region9: #{tpu_custom_call.1} parent=5 // pred_check
        _
      $region10: #{tpu_custom_call.1} parent=5 // pred_check_branch
        %137 = sbr.rel (%p134) target = $region12
      $region11: #{tpu_custom_call.1} parent=5 // pred_region
        %s138 = ssub.s32 %s14, 1
        // Predicated region
        $region13: #{tpu_custom_call.1} parent=11 // pred_check
          %p139 = pneg %p75
        $region14: #{tpu_custom_call.1} parent=11 // pred_check_branch
          %141 = sbr.rel (%p139) target = $region16
        $region15: #{tpu_custom_call.1} parent=11 // pred_region
          %s143 = ssub.s32 64, 64
          %144 = vsyncadd [#allocation4], %s143
          %147 = dma.hbm_to_smem %s1, 64, [#allocation6], [#allocation4]
        $region16: #{tpu_custom_call.1} parent=11 // pred_fallthru
          _
        // Predicated region
        $region17: #{tpu_custom_call.1} parent=11 // pred_check
          %p148 = pneg %p96
        $region18: #{tpu_custom_call.1} parent=11 // pred_check_branch
          %150 = sbr.rel (%p148) target = $region20
        $region19: #{tpu_custom_call.1} parent=11 // pred_region
          %s152 = ssub.s32 16, 16
          %153 = vsyncadd [#allocation5], %s152
          %s155 = sshll.u32 %s2, 4
          %s156 = int_to_ptr.vmem [resolvable:$true] %s155
          %158 = dma.vmem_to_smem %s156, 16, [#allocation7], [#allocation5]
        $region20: #{tpu_custom_call.1} parent=11 // pred_fallthru
          _
      $region12: #{tpu_custom_call.1} parent=5 // pred_fallthru
        _
      %p159 = scmp.lt.s32.totalorder %s14, 2
      // Predicated region
      $region21: #{tpu_custom_call.1} parent=5 // pred_check
        %p160 = pneg %p159
      $region22: #{tpu_custom_call.1} parent=5 // pred_check_branch
        %162 = sbr.rel (%p160) target = $region24
      $region23: #{tpu_custom_call.1} parent=5 // pred_region
        // Predicated region
        $region25: #{tpu_custom_call.1} parent=23 // pred_check
          %p163 = pneg %p48
        $region26: #{tpu_custom_call.1} parent=23 // pred_check_branch
          %165 = sbr.rel (%p163) target = $region28
        $region27: #{tpu_custom_call.1} parent=23 // pred_region
          %s166 = sand.u32 %s38, 1
          %s167 = scalar_lea.sflag [#allocation3], %s166
          %s168 = sand.u32 %s38, 1
          %s169 = smul.addr %s168, 8
          %s170 = scalar_lea.vmem [#allocation2], %s169
          %s171 = smul.u32 2, %s22
          %s173 = ssub.s32 128, 128
          %174 = vsyncadd %s167, %s173
          %s175 = smul.addr %s21, 2
          %s176 = sadd.s32 %s171, %s175
          %s177 = smul.addr %s176, 64
          %s178 = scalar_lea.hbm %s0, %s177
          %s180 = sshll.u32 %s170, 4
          %s181 = int_to_ptr.vmem [resolvable:$true] %s180
          %183 = dma.hbm_to_vmem [thread:$0]  %s178, 128, %s181, %s167
        $region28: #{tpu_custom_call.1} parent=23 // pred_fallthru
          _
      $region24: #{tpu_custom_call.1} parent=5 // pred_fallthru
        _
      %p184 = scmp.le.s32.totalorder 1, %s14
      %p185 = scmp.lt.s32.totalorder %s14, 3
      %p186 = pnand %p184, %p185
      %p187 = pneg %p186
      // Predicated region
      $region29: #{tpu_custom_call.1} parent=5 // pred_check
        _
      $region30: #{tpu_custom_call.1} parent=5 // pred_check_branch
        %189 = sbr.rel (%p186) target = $region32
      $region31: #{tpu_custom_call.1} parent=5 // pred_region
        %s190 = ssub.s32 %s14, 1
        %s191 = sand.u32 %s41, 1
        %s192 = scalar_lea.sflag [#allocation3], %s191
        %s193 = sand.u32 %s41, 1
        %s194 = smul.addr %s193, 8
        %s195 = scalar_lea.vmem [#allocation2], %s194
        // Predicated region
        $region33: #{tpu_custom_call.1} parent=31 // pred_check
          %p196 = pneg %p54
        $region34: #{tpu_custom_call.1} parent=31 // pred_check_branch
          %198 = sbr.rel (%p196) target = $region36
        $region35: #{tpu_custom_call.1} parent=31 // pred_region
          %199 = dma.done %s192, 128
        $region36: #{tpu_custom_call.1} parent=31 // pred_fallthru
          _
        // Predicated region
        $region37: #{tpu_custom_call.1} parent=31 // pred_check
          %p200 = pneg %p75
        $region38: #{tpu_custom_call.1} parent=31 // pred_check_branch
          %202 = sbr.rel (%p200) target = $region40
        $region39: #{tpu_custom_call.1} parent=31 // pred_region
          %203 = dma.done [#allocation4], 64
        $region40: #{tpu_custom_call.1} parent=31 // pred_fallthru
          _
        // Predicated region
        $region41: #{tpu_custom_call.1} parent=31 // pred_check
          %p204 = pneg %p96
        $region42: #{tpu_custom_call.1} parent=31 // pred_check_branch
          %206 = sbr.rel (%p204) target = $region44
        $region43: #{tpu_custom_call.1} parent=31 // pred_region
          %207 = dma.done [#allocation5], 16
        $region44: #{tpu_custom_call.1} parent=31 // pred_fallthru
          _
        %208 = sfence
        %s209 = sand.u32 %s41, 1
        %s210 = scalar_lea.sflag [#allocation3], %s209
        %s211 = sand.u32 %s41, 1
        %s212 = smul.addr %s211, 8
        %s213 = scalar_lea.vmem [#allocation2], %s212
        %p214 = pneg %p54
        %p215 = pneg %p51
        %p216 = pneg %p75
        %p217 = pneg %p72
        %p218 = pneg %p96
        %p219 = pneg %p93
        %p220 = pneg %p124
        %p221 = pneg %p121
        %s222 = smul.u32 2, %s24
        %p223 = scmp.lt.s32.totalorder %s23, 1
        %s224 = scalar_select %p223, %s23, 1
        %p225 = scmp.lt.s32.totalorder %s222, 1
        %s226 = scalar_select %p225, %s222, 1
        %s227 = smul.addr %s224, 2
        %s228 = sadd.s32 %s226, %s227
        %s229 = smul.addr %s228, 4
        %s230 = scalar_lea.vmem %s3, %s229
        %s231 = smul.u32 2, %s24
        %s232 = smul.u32 2, %s24
        %p233 = scmp.lt.s32.totalorder %s23, 1
        %s234 = scalar_select %p233, %s23, 1
        %p235 = scmp.lt.s32.totalorder %s232, 1
        %s236 = scalar_select %p235, %s232, 1
        %s237 = smul.addr %s234, 2
        %s238 = sadd.s32 %s236, %s237
        %s239 = smul.addr %s238, 4
        %s240 = scalar_lea.vmem %s3, %s239
        %s241 = smul.u32 2, %s24
        %v242 = vld [vmem:[%s195] sm:$0xff]
        %s243 = sld [smem:[#allocation6]]
        %v244 = vstv %s243
        %v245 = vmul.f32 %v242, %v244
        %s246 = sld [smem:[#allocation7]]
        %v247 = vstv %s246
        %v248 = vadd.f32 %v245, %v247
        %s249 = sld [smem:[#allocation6 + $0x1]]
        %v250 = vstv %s249
        %v251 = vmul.f32 %v242, %v250
        %v253 = vrot.slane %v251, 5
        %v254 = vrot.slane %v253, 4
        %v256 = vadd.f32 %v248, %v254
        %s257 = sld [smem:[#allocation6 + $0x2]]
        %v258 = vstv %s257
        %v259 = vmul.f32 %v242, %v258
        %v261 = vrot.slane %v259, 6
        %v262 = vrot.slane %v261, 4
        %v264 = vadd.f32 %v256, %v262
        %s265 = sld [smem:[#allocation6 + $0x3]]
        %v266 = vstv %s265
        %v267 = vmul.f32 %v242, %v266
        %v269 = vrot.slane %v267, 7
        %v270 = vrot.slane %v269, 4
        %v272 = vadd.f32 %v264, %v270
        %v273 = vxor.u32 %v272, 2147483648
        %v274 = vmul.f32 %v273, 1.442695
        %v275 = vpow.pop %v274
        %v276 = vadd.f32 %v275, 1.0
        %v277 = vrcp.pop %v276
        %v278 = vmul.f32 1.0, %v277
        %v281 = vunpack.c.l.s4 1966171168
        %v282 = vunpack.c.0.s8 %v281
        %v283 = vlaneseq
        %v284 = vshrl.u32 %v283, 7
        %v285 = vsub.s32 %v282, %v284
        %v286 = vrot.slane %v278, %v285
        %v288 = vunpack.c.l.s4 1966171168
        %v289 = vunpack.c.0.s8 %v288
        %v290 = vlaneseq
        %v291 = vshrl.u32 %v290, 7
        %v292 = vsub.s32 %v289, %v291
        %v293 = vrot.slane %v286, %v292
        %v295 = vlaneseq
        %vm296 = vcmp.ge.s32.totalorder %v295, 0
        %vm297 = vcmp.lt.s32.totalorder %v295, 256
        %vm298 = vmand %vm296, %vm297
        %299 = vst.msk [vmem:[%s240] ss:$4 sm:$0x3] %vm298, %v293
        %s300 = sld [smem:[#allocation6 + $0x80]]
        %v301 = vstv %s300
        %v302 = vmul.f32 %v242, %v301
        %s303 = sld [smem:[#allocation7 + $0x1]]
        %v304 = vstv %s303
        %v305 = vadd.f32 %v302, %v304
        %s306 = sld [smem:[#allocation6 + $0x81]]
        %v307 = vstv %s306
        %v308 = vmul.f32 %v242, %v307
        %v310 = vrot.slane %v308, 5
        %v311 = vrot.slane %v310, 4
        %v313 = vadd.f32 %v305, %v311
        %s314 = sld [smem:[#allocation6 + $0x82]]
        %v315 = vstv %s314
        %v316 = vmul.f32 %v242, %v315
        %v318 = vrot.slane %v316, 6
        %v319 = vrot.slane %v318, 4
        %v321 = vadd.f32 %v313, %v319
        %s322 = sld [smem:[#allocation6 + $0x83]]
        %v323 = vstv %s322
        %v324 = vmul.f32 %v242, %v323
        %v326 = vrot.slane %v324, 7
        %v327 = vrot.slane %v326, 4
        %v329 = vadd.f32 %v321, %v327
        %v330 = vxor.u32 %v329, 2147483648
        %v331 = vmul.f32 %v330, 1.442695
        %v332 = vpow.pop %v331
        %v333 = vadd.f32 %v332, 1.0
        %v334 = vrcp.pop %v333
        %v335 = vmul.f32 1.0, %v334
        %v338 = vunpack.c.l.s4 1966171168
        %v339 = vunpack.c.0.s8 %v338
        %v340 = vlaneseq
        %v341 = vshrl.u32 %v340, 7
        %v342 = vsub.s32 %v339, %v341
        %v343 = vrot.slane %v335, %v342
        %v345 = vunpack.c.l.s4 1966171168
        %v346 = vunpack.c.0.s8 %v345
        %v347 = vlaneseq
        %v348 = vshrl.u32 %v347, 7
        %v349 = vsub.s32 %v346, %v348
        %v350 = vrot.slane %v343, %v349
        %s352 = scalar_lea.vmem %s240, 1
        %353 = vst.msk [vmem:[%s352] ss:$4 sm:$0x3] %vm298, %v350
        %s354 = sld [smem:[#allocation6 + $0x100]]
        %v355 = vstv %s354
        %v356 = vmul.f32 %v242, %v355
        %s357 = sld [smem:[#allocation7 + $0x2]]
        %v358 = vstv %s357
        %v359 = vadd.f32 %v356, %v358
        %s360 = sld [smem:[#allocation6 + $0x101]]
        %v361 = vstv %s360
        %v362 = vmul.f32 %v242, %v361
        %v364 = vrot.slane %v362, 5
        %v365 = vrot.slane %v364, 4
        %v367 = vadd.f32 %v359, %v365
        %s368 = sld [smem:[#allocation6 + $0x102]]
        %v369 = vstv %s368
        %v370 = vmul.f32 %v242, %v369
        %v372 = vrot.slane %v370, 6
        %v373 = vrot.slane %v372, 4
        %v375 = vadd.f32 %v367, %v373
        %s376 = sld [smem:[#allocation6 + $0x103]]
        %v377 = vstv %s376
        %v378 = vmul.f32 %v242, %v377
        %v380 = vrot.slane %v378, 7
        %v381 = vrot.slane %v380, 4
        %v383 = vadd.f32 %v375, %v381
        %v384 = vxor.u32 %v383, 2147483648
        %v385 = vmul.f32 %v384, 1.442695
        %v386 = vpow.pop %v385
        %v387 = vadd.f32 %v386, 1.0
        %v388 = vrcp.pop %v387
        %v389 = vmul.f32 1.0, %v388
        %v392 = vunpack.c.l.s4 1966171168
        %v393 = vunpack.c.0.s8 %v392
        %v394 = vlaneseq
        %v395 = vshrl.u32 %v394, 7
        %v396 = vsub.s32 %v393, %v395
        %v397 = vrot.slane %v389, %v396
        %v399 = vunpack.c.l.s4 1966171168
        %v400 = vunpack.c.0.s8 %v399
        %v401 = vlaneseq
        %v402 = vshrl.u32 %v401, 7
        %v403 = vsub.s32 %v400, %v402
        %v404 = vrot.slane %v397, %v403
        %s406 = scalar_lea.vmem %s240, 2
        %407 = vst.msk [vmem:[%s406] ss:$4 sm:$0x3] %vm298, %v404
        %s408 = smul.u32 2, %s24
        %p409 = scmp.lt.s32.totalorder %s23, 1
        %s410 = scalar_select %p409, %s23, 1
        %p411 = scmp.lt.s32.totalorder %s408, 1
        %s412 = scalar_select %p411, %s408, 1
        %s413 = smul.addr %s410, 2
        %s414 = sadd.s32 %s412, %s413
        %s415 = smul.addr %s414, 4
        %s416 = scalar_lea.vmem %s3, %s415
        // Predicated region
        $region45: #{tpu_custom_call.1} parent=31 // pred_check
          %p417 = pneg %p121
        $region46: #{tpu_custom_call.1} parent=31 // pred_check_branch
          %419 = sbr.rel (%p417) target = $region48
        $region47: #{tpu_custom_call.1} parent=31 // pred_region
          %s420 = smul.u32 2, %s24
        $region48: #{tpu_custom_call.1} parent=31 // pred_fallthru
          _
      $region32: #{tpu_custom_call.1} parent=5 // pred_fallthru
        _
      %p421 = scmp.le.s32.totalorder 2, %s14
      // Predicated region
      $region49: #{tpu_custom_call.1} parent=5 // pred_check
        %p422 = pneg %p421
      $region50: #{tpu_custom_call.1} parent=5 // pred_check_branch
        %424 = sbr.rel (%p422) target = $region52
      $region51: #{tpu_custom_call.1} parent=5 // pred_region
        %s425 = ssub.s32 %s14, 2
        // Predicated region
        $region53: #{tpu_custom_call.1} parent=51 // pred_check
          %p426 = pneg %p127
        $region54: #{tpu_custom_call.1} parent=51 // pred_check_branch
          %428 = sbr.rel (%p426) target = $region56
        $region55: #{tpu_custom_call.1} parent=51 // pred_region
          %s429 = smul.u32 2, %s26
          %p430 = scmp.lt.s32.totalorder %s25, 1
          %s431 = scalar_select %p430, %s25, 1
          %p432 = scmp.lt.s32.totalorder %s429, 1
          %s433 = scalar_select %p432, %s429, 1
          %s434 = smul.addr %s431, 2
          %s435 = sadd.s32 %s433, %s434
          %s436 = smul.addr %s435, 4
          %s437 = scalar_lea.vmem %s3, %s436
        $region56: #{tpu_custom_call.1} parent=51 // pred_fallthru
          _
      $region52: #{tpu_custom_call.1} parent=5 // pred_fallthru
        _
    $region6: #{tpu_custom_call.1} parent=1 // loop_footer
      %s18 = sadd.s32 1, %s14
    $region7: #{tpu_custom_call.1} parent=1 // loop_footer_branch
      %13 = sbr.rel target = $region3
    $region8: #{tpu_custom_call.1} parent=1 // loop_exit
      _
    %438 = vsyncpa [#allocation3], 1
    %s439 = scalar_lea.sflag [#allocation3], 1
    %440 = vsyncpa %s439, 1
    %441 = vsyncpa [#allocation4], 1
    %s442 = scalar_lea.sflag [#allocation4], 1
    %443 = vsyncpa %s442, 1
    %444 = vsyncpa [#allocation5], 1
    %s445 = scalar_lea.sflag [#allocation5], 1
    %446 = vsyncpa %s445, 1

</llo_original>
